<compile_context>
chip_gen: v7x
topology: tpu7x:2x2x1
jax: 0.10.0
libtpu: 0.0.40
codegen_flags: <defaults>
</compile_context>

<pallas_src>
import functools
import math

import jax
import jax.numpy as jnp
from jax import lax
from jax.experimental import pallas as pl
from jax.experimental.pallas import tpu as pltpu


# --------------------------- hardware-aware config ----------------------------

def _vmem_limit_bytes():
    """Generation-aware VMEM limit (leave ~25% headroom for Mosaic scratch)."""
    default = 32 * 1024 * 1024
    try:
        cap = int(pltpu.get_tpu_info().vmem_capacity_bytes)
    except Exception:
        return default
    # v7x: 64 MiB physical -> ~48 MiB; v5e/v6e: 128 MiB physical -> 96 MiB.
    return max(default, min(cap * 3 // 4, 96 * 1024 * 1024))


def _default_mxu_dtype():
    """bf16 MXU operands on v6e/v7x (f32 accumulation); f32 on v5e and older."""
    try:
        kind = jax.devices()[0].device_kind.lower()
    except Exception:
        return jnp.float32
    if "v6" in kind or "v7" in kind:
        return jnp.bfloat16
    return jnp.float32


def _pick_tile(n, target):
    """Largest multiple-of-8 divisor of n that is <= target, else n (full dim)."""
    if n <= target:
        return n
    for t in range(target, 7, -1):
        if n % t == 0 and t % 8 == 0:
            return t
    return n


def _tile_targets(vmem_limit):
    # Bigger Sq/Sk tiles where VMEM allows (v5e/v6e), smaller on v7x (64 MiB).
    if vmem_limit >= 64 * 1024 * 1024:
        return 512, 1024
    return 256, 512


# ----------------------------- projection kernel ------------------------------

def _proj_kernel(x_ref, w_ref, b_ref, *o_refs, n_heads, d_k, scale, mxu_dtype):
    """y = x @ w + b; written head-major; output 0 optionally pre-scaled."""
    x = x_ref[...].astype(mxu_dtype)
    y = jnp.dot(x, w_ref[...], preferred_element_type=jnp.float32) + b_ref[...]
    d_model = n_heads * d_k
    for i, o_ref in enumerate(o_refs):
        base = i * d_model
        for h in range(n_heads):                   # static head split (once per
            chunk = y[:, base + h * d_k: base + (h + 1) * d_k]   # element, not
            if i == 0 and scale is not None:                     # per k-step)
                chunk = chunk * scale              # fold 1/sqrt(d_k) into q
            o_ref[h, :, :] = chunk.astype(o_ref.dtype)


def _project_heads(x, w, b, *, n_out, n_heads, d_k, scale, mxu_dtype, out_dtype,
                   vmem_limit):
    """x @ w + b -> n_out head-major (B, H, S, d_k) arrays (one pallas_call)."""
    B, S, D = x.shape
    ts = _pick_tile(S, 512)
    w = jnp.asarray(w).astype(mxu_dtype)
    b = jnp.asarray(b).reshape(1, -1).astype(jnp.float32)
    nD = w.shape[1]
    kern = functools.partial(_proj_kernel, n_heads=n_heads, d_k=d_k, scale=scale,
                             mxu_dtype=mxu_dtype)
    outs = pl.pallas_call(
        kern,
        out_shape=tuple(jax.ShapeDtypeStruct((B, n_heads, S, d_k), out_dtype)
                        for _ in range(n_out)),
        grid=(B, S // ts),
        in_specs=[
            pl.BlockSpec((None, ts, D), lambda bb, si: (bb, si, 0)),
            pl.BlockSpec((D, nD), lambda bb, si: (0, 0)),     # constant index:
            pl.BlockSpec((1, nD), lambda bb, si: (0, 0)),     # fetched once
        ],
        out_specs=tuple(
            pl.BlockSpec((None, n_heads, ts, d_k), lambda bb, si: (bb, 0, si, 0))
            for _ in range(n_out)),
        compiler_params=pltpu.CompilerParams(
            dimension_semantics=("parallel", "parallel"),
            vmem_limit_bytes=vmem_limit),
    )(x, w, b)
    return outs if isinstance(outs, (tuple, list)) else (outs,)


# ------------------------- flash attention + out-proj -------------------------

def _flash_mha_kernel(*refs, has_mask, mxu_dtype):
    if has_mask:
        (q_ref, k_ref, v_ref, mask_ref, woh_ref, bo_ref, o_ref,
         m_sc, l_sc, acc_sc, oacc_sc) = refs
    else:
        (q_ref, k_ref, v_ref, woh_ref, bo_ref, o_ref,
         m_sc, l_sc, acc_sc, oacc_sc) = refs
        mask_ref = None

    h = pl.program_id(2)
    kj = pl.program_id(3)
    nh = pl.num_programs(2)
    nk = pl.num_programs(3)

    # New (batch, q-tile): reset the fused output-projection accumulator.
    @pl.when(jnp.logical_and(h == 0, kj == 0))
    def _():
        oacc_sc[...] = jnp.zeros(oacc_sc.shape, oacc_sc.dtype)

    # New head: reset the online-softmax running state.
    @pl.when(kj == 0)
    def _():
        m_sc[...] = jnp.full(m_sc.shape, -jnp.inf, m_sc.dtype)
        l_sc[...] = jnp.zeros(l_sc.shape, l_sc.dtype)
        acc_sc[...] = jnp.zeros(acc_sc.shape, acc_sc.dtype)

    q = q_ref[...].astype(mxu_dtype)            # (tq, d_k); already *1/sqrt(d_k)
    k = k_ref[...].astype(mxu_dtype)            # (tk, d_k)
    s = lax.dot_general(q, k, (((1,), (1,)), ((), ())),
                        preferred_element_type=jnp.float32)        # (tq, tk)
    if has_mask:
        s = jnp.where(mask_ref[...] != 0, s, -1e9)   # masked_fill(mask==0,-1e9)

    # Online softmax, f32 on the VPU/EUP (v5e has no bf16 VPU/EUP).
    m_prev = m_sc[...]
    m_new = jnp.maximum(m_prev, jnp.max(s, axis=-1, keepdims=True))
    alpha = jnp.exp(m_prev - m_new)
    p = jnp.exp(s - m_new)
    l_sc[...] = alpha * l_sc[...] + jnp.sum(p, axis=-1, keepdims=True)
    acc_sc[...] = alpha * acc_sc[...] + jnp.dot(
        p.astype(mxu_dtype), v_ref[...].astype(mxu_dtype),
        preferred_element_type=jnp.float32)
    m_sc[...] = m_new

    # Last Sk tile of this head: finish the softmax and fold this head's slice
    # of the output projection (sum_h attn_h @ wo[h*d_k:(h+1)*d_k, :]) into the
    # lane-dense (tq, D) accumulator — no per-head concat, no head slicing.
    @pl.when(kj == nk - 1)
    def _():
        attn_h = acc_sc[...] / l_sc[...]
        oacc_sc[...] += jnp.dot(attn_h.astype(mxu_dtype), woh_ref[...],
                                preferred_element_type=jnp.float32)

    # Very last step for this (batch, q-tile): add bias and emit the output.
    @pl.when(jnp.logical_and(h == nh - 1, kj == nk - 1))
    def _():
        o_ref[...] = (oacc_sc[...] + bo_ref[...]).astype(o_ref.dtype)


def _flash_attention(qh, kh, vh, mask, wo, bo, *, out_dtype, mxu_dtype,
                     vmem_limit):
    B, H, Sq, d_k = qh.shape
    Sk = kh.shape[2]
    D = H * d_k
    tq_target, tk_target = _tile_targets(vmem_limit)
    tq = _pick_tile(Sq, tq_target)
    tk = _pick_tile(Sk, tk_target)
    grid = (B, Sq // tq, H, Sk // tk)
    has_mask = mask is not None

    woh = jnp.asarray(wo).reshape(H, d_k, D).astype(mxu_dtype)  # per-head w_o rows
    bo2 = jnp.asarray(bo).reshape(1, D).astype(jnp.float32)

    inputs = [qh, kh, vh]
    in_specs = [
        pl.BlockSpec((None, None, tq, d_k), lambda b, qi, h, kj: (b, h, qi, 0)),
        pl.BlockSpec((None, None, tk, d_k), lambda b, qi, h, kj: (b, h, kj, 0)),
        pl.BlockSpec((None, None, tk, d_k), lambda b, qi, h, kj: (b, h, kj, 0)),
    ]
    if has_mask:
        inputs.append(mask)
        in_specs.append(
            pl.BlockSpec((None, tq, tk), lambda b, qi, h, kj: (b, qi, kj)))
    inputs += [woh, bo2]
    in_specs += [
        pl.BlockSpec((None, d_k, D), lambda b, qi, h, kj: (h, 0, 0)),
        pl.BlockSpec((1, D), lambda b, qi, h, kj: (0, 0)),
    ]

    kern = functools.partial(_flash_mha_kernel, has_mask=has_mask,
                             mxu_dtype=mxu_dtype)

    bytes_in = sum(int(a.size) * a.dtype.itemsize for a in inputs)
    cost = pl.CostEstimate(
        flops=int(4 * B * H * Sq * Sk * d_k + 2 * B * Sq * D * D),
        transcendentals=int(B * H * Sq * Sk),
        bytes_accessed=int(bytes_in + B * Sq * D * jnp.dtype(out_dtype).itemsize))

    return pl.pallas_call(
        kern,
        out_shape=jax.ShapeDtypeStruct((B, Sq, D), out_dtype),
        grid=grid,
        in_specs=in_specs,
        out_specs=pl.BlockSpec((None, tq, D), lambda b, qi, h, kj: (b, qi, 0)),
        scratch_shapes=[
            pltpu.VMEM((tq, 1), jnp.float32),     # m: running max
            pltpu.VMEM((tq, 1), jnp.float32),     # l: running denominator
            pltpu.VMEM((tq, d_k), jnp.float32),   # acc: running P @ V
            pltpu.VMEM((tq, D), jnp.float32),     # fused output-proj accumulator
        ],
        compiler_params=pltpu.CompilerParams(
            dimension_semantics=("parallel", "parallel",
                                 "arbitrary", "arbitrary"),
            vmem_limit_bytes=vmem_limit),
        cost_estimate=cost,
    )(*inputs)


# --------------------------------- public API ---------------------------------

def multi_head_attention(params, query, key, value, mask=None, *, n_heads,
                         mxu_dtype=None):
    """Pallas forward matching MultiHeadAttention.forward(query, key, value, mask)."""
    B, Sq, D = query.shape
    Sk = key.shape[1]
    assert D % n_heads == 0
    d_k = D // n_heads
    scale = 1.0 / math.sqrt(d_k)
    if mxu_dtype is None:
        mxu_dtype = _default_mxu_dtype()
    vmem_limit = _vmem_limit_bytes()

    wqkv, bqkv = params["wqkv"], params["bqkv"]
    wo, bo = params["wo"], params["bo"]

    common = dict(n_heads=n_heads, d_k=d_k, mxu_dtype=mxu_dtype,
                  out_dtype=mxu_dtype, vmem_limit=vmem_limit)

    # NOTE: `is` identity test — distinct-but-equal tensors fall back to the
    # (numerically identical) cross-attention projection path.
    if (query is key) and (key is value):
        qh, kh, vh = _project_heads(query, wqkv, bqkv, n_out=3, scale=scale,
                                    **common)
    else:
        (qh,) = _project_heads(query, wqkv[:, :D], bqkv[:D], n_out=1,
                               scale=scale, **common)
        if key is value:
            kh, vh = _project_heads(key, wqkv[:, D:], bqkv[D:], n_out=2,
                                    scale=None, **common)
        else:
            (kh,) = _project_heads(key, wqkv[:, D:2 * D], bqkv[D:2 * D],
                                   n_out=1, scale=None, **common)
            (vh,) = _project_heads(value, wqkv[:, 2 * D:], bqkv[2 * D:],
                                   n_out=1, scale=None, **common)

    mask_i8 = None
    if mask is not None:
        m = jnp.asarray(mask)
        if m.ndim == 4:
            if m.shape[1] != 1:
                raise NotImplementedError("per-head masks are not supported")
            m = m[:, 0]
        # Head-free int8 mask: (B, Sq, Sk) instead of (B, H, Sq, Sk) float32.
        mask_i8 = (jnp.broadcast_to(m, (B, Sq, Sk)) != 0).astype(jnp.int8)

    return _flash_attention(qh, kh, vh, mask_i8, wo, bo,
                            out_dtype=query.dtype, mxu_dtype=mxu_dtype,
                            vmem_limit=vmem_limit)


# ------------------------------ reference & init ------------------------------

def mha_reference(params, query, key, value, mask, n_heads):
    """Pure-JAX reproduction of the PyTorch forward (for verification)."""
    B, Sq, D = query.shape
    d_k = D // n_heads
    wqkv, bqkv = params["wqkv"], params["bqkv"]
    wq, wk, wv = wqkv[:, :D], wqkv[:, D:2 * D], wqkv[:, 2 * D:]
    bq, bk, bv = bqkv[:D], bqkv[D:2 * D], bqkv[2 * D:]

    def proj_split(x, w, b):
        y = x @ w + b
        return y.reshape(x.shape[0], x.shape[1], n_heads, d_k).transpose(0, 2, 1, 3)

    q = proj_split(query, wq, bq)
    k = proj_split(key, wk, bk)
    v = proj_split(value, wv, bv)
    s = jnp.einsum("bhqd,bhkd->bhqk", q, k) / math.sqrt(d_k)
    if mask is not None:
        s = jnp.where(jnp.broadcast_to(mask, s.shape) == 0, -1e9, s)
    p = jax.nn.softmax(s, axis=-1)
    o = jnp.einsum("bhqk,bhkd->bhqd", p, v)
    o = o.transpose(0, 2, 1, 3).reshape(B, Sq, D)
    return o @ params["wo"] + params["bo"]


def init_mha_params(key, d_model):
    """nn.Linear-style init; Q/K/V weights stored pre-fused as [D, 3D]."""
    ks = jax.random.split(key, 8)
    bound = 1.0 / math.sqrt(d_model)

    def lin(kw, kb):
        w = jax.random.uniform(kw, (d_model, d_model), jnp.float32, -bound, bound)
        b = jax.random.uniform(kb, (d_model,), jnp.float32, -bound, bound)
        return w, b

    wq, bq = lin(ks[0], ks[1])
    wk, bk = lin(ks[2], ks[3])
    wv, bv = lin(ks[4], ks[5])
    wo, bo = lin(ks[6], ks[7])
    return {"wqkv": jnp.concatenate([wq, wk, wv], axis=1),
            "bqkv": jnp.concatenate([bq, bk, bv]),
            "wo": wo, "bo": bo}


# ----------------------------------- main -------------------------------------

if __name__ == "__main__":
    d_model, n_heads = 32, 4
    batch, seq = 2, 8

    root = jax.random.PRNGKey(0)
    k_param, k_x, k_mem = jax.random.split(root, 3)

    params = init_mha_params(k_param, d_model)
    x = jax.random.normal(k_x, (batch, seq, d_model), jnp.float32)
    mem = jax.random.normal(k_mem, (batch, seq, d_model), jnp.float32)

    # 1) self-attention (fused (S,3D) QKV matmul path), no mask, f32 MXU operands
    out = multi_head_attention(params, x, x, x, n_heads=n_heads,
                               mxu_dtype=jnp.float32)
    jax.block_until_ready(out)
    ref = mha_reference(params, x, x, x, None, n_heads)
    assert out.shape == (batch, seq, d_model)
    assert bool(jnp.all(jnp.isfinite(out)))
    assert bool(jnp.allclose(out, ref, atol=2e-2, rtol=2e-2))

    # 2) cross-attention (query != key is value) with a causal mask, f32 MXU
    causal = jnp.tril(jnp.ones((seq, seq), jnp.float32))
    out2 = multi_head_attention(params, x, mem, mem, mask=causal,
                                n_heads=n_heads, mxu_dtype=jnp.float32)
    jax.block_until_ready(out2)
    ref2 = mha_reference(params, x, mem, mem, causal, n_heads)
    assert bool(jnp.allclose(out2, ref2, atol=2e-2, rtol=2e-2))

    # 3) hardware-default MXU dtype (bf16 on v6e/v7x, f32 on v5e), masked self-attn
    out3 = multi_head_attention(params, x, x, x, mask=causal, n_heads=n_heads)
    jax.block_until_ready(out3)
    ref3 = mha_reference(params, x, x, x, causal, n_heads)
    assert bool(jnp.all(jnp.isfinite(out3)))
    assert bool(jnp.allclose(out3, ref3, atol=1e-1, rtol=1e-1))

    print("KERNEL_OK")
</pallas_src>

<mosaic_0001>
module attributes {stable_mosaic.version = 11 : i64} {
  func.func @_proj_kernel(%arg0: i32, %arg1: i32, %arg2: memref<1x8x32xf32, #tpu.memory_space<vmem>>, %arg3: memref<32x96xf32, #tpu.memory_space<vmem>>, %arg4: memref<1x96xf32, #tpu.memory_space<vmem>>, %arg5: memref<1x4x8x8xf32, #tpu.memory_space<vmem>>, %arg6: memref<1x4x8x8xf32, #tpu.memory_space<vmem>>, %arg7: memref<1x4x8x8xf32, #tpu.memory_space<vmem>>) attributes {dimension_semantics = [#tpu.dimension_semantics<parallel>, #tpu.dimension_semantics<parallel>], iteration_bounds = array<i64: 2, 1>, scalar_prefetch = 0 : i64, scratch_operands = 0 : i64, tpu.core_type = #tpu.core_type<tc>, window_params = [{transform_indices = @transform_0, window_bounds = array<i64: 1, 8, 32>}, {pipeline_mode = #tpu.pipeline_mode<synchronous>, transform_indices = @transform_1, window_bounds = array<i64: 32, 96>}, {pipeline_mode = #tpu.pipeline_mode<synchronous>, transform_indices = @transform_2, window_bounds = array<i64: 1, 96>}, {transform_indices = @transform_3, window_bounds = array<i64: 1, 4, 8, 8>}, {transform_indices = @transform_4, window_bounds = array<i64: 1, 4, 8, 8>}, {transform_indices = @transform_5, window_bounds = array<i64: 1, 4, 8, 8>}]} {
    %c0 = arith.constant 0 : index
    %c0_0 = arith.constant 0 : index
    %c0_1 = arith.constant 0 : index
    %0 = vector.load %arg2[%c0, %c0_0, %c0_1] : memref<1x8x32xf32, #tpu.memory_space<vmem>>, vector<1x8x32xf32>
    %1 = vector.shape_cast %0 : vector<1x8x32xf32> to vector<8x32xf32>
    %c0_2 = arith.constant 0 : index
    %c0_3 = arith.constant 0 : index
    %2 = vector.load %arg3[%c0_2, %c0_3] : memref<32x96xf32, #tpu.memory_space<vmem>>, vector<32x96xf32>
    %cst = arith.constant dense<0.000000e+00> : vector<8x96xf32>
    %3 = tpu.matmul %1, %2, %cst {dimension_numbers = #tpu.dot_dimension_numbers<[1], [0], [0], [1], [0, 0, 1, 1], [], []>} : vector<8x32xf32>, vector<32x96xf32>, vector<8x96xf32> -> vector<8x96xf32>
    %c0_4 = arith.constant 0 : index
    %c0_5 = arith.constant 0 : index
    %4 = vector.load %arg4[%c0_4, %c0_5] : memref<1x96xf32, #tpu.memory_space<vmem>>, vector<1x96xf32>
    %5 = vector.broadcast %4 : vector<1x96xf32> to vector<8x96xf32>
    %6 = arith.addf %3, %5 : vector<8x96xf32>
    %7 = vector.extract_strided_slice %6 {offsets = [0, 0], sizes = [8, 8], strides = [1, 1]} : vector<8x96xf32> to vector<8x8xf32>
    %cst_6 = arith.constant 0.353553385 : f32
    %8 = vector.broadcast %cst_6 : f32 to vector<8x8xf32>
    %9 = arith.mulf %7, %8 : vector<8x8xf32>
    %c0_7 = arith.constant 0 : index
    %c0_8 = arith.constant 0 : index
    %c0_9 = arith.constant 0 : index
    %c0_10 = arith.constant 0 : index
    %10 = vector.load %arg5[%c0_7, %c0_8, %c0_9, %c0_10] : memref<1x4x8x8xf32, #tpu.memory_space<vmem>>, vector<1x1x8x8xf32>
    %11 = vector.shape_cast %10 : vector<1x1x8x8xf32> to vector<8x8xf32>
    %12 = vector.shape_cast %9 : vector<8x8xf32> to vector<1x1x8x8xf32>
    tpu.vector_store %arg5[%c0_7, %c0_8, %c0_9, %c0_10], %12 {strides = array<i32>} : memref<1x4x8x8xf32, #tpu.memory_space<vmem>>, vector<1x1x8x8xf32>,
    %13 = vector.extract_strided_slice %6 {offsets = [0, 8], sizes = [8, 8], strides = [1, 1]} : vector<8x96xf32> to vector<8x8xf32>
    %cst_11 = arith.constant 0.353553385 : f32
    %14 = vector.broadcast %cst_11 : f32 to vector<8x8xf32>
    %15 = arith.mulf %13, %14 : vector<8x8xf32>
    %c0_12 = arith.constant 0 : index
    %c1 = arith.constant 1 : index
    %c0_13 = arith.constant 0 : index
    %c0_14 = arith.constant 0 : index
    %16 = vector.load %arg5[%c0_12, %c1, %c0_13, %c0_14] : memref<1x4x8x8xf32, #tpu.memory_space<vmem>>, vector<1x1x8x8xf32>
    %17 = vector.shape_cast %16 : vector<1x1x8x8xf32> to vector<8x8xf32>
    %18 = vector.shape_cast %15 : vector<8x8xf32> to vector<1x1x8x8xf32>
    tpu.vector_store %arg5[%c0_12, %c1, %c0_13, %c0_14], %18 {strides = array<i32>} : memref<1x4x8x8xf32, #tpu.memory_space<vmem>>, vector<1x1x8x8xf32>,
    %19 = vector.extract_strided_slice %6 {offsets = [0, 16], sizes = [8, 8], strides = [1, 1]} : vector<8x96xf32> to vector<8x8xf32>
    %cst_15 = arith.constant 0.353553385 : f32
    %20 = vector.broadcast %cst_15 : f32 to vector<8x8xf32>
    %21 = arith.mulf %19, %20 : vector<8x8xf32>
    %c0_16 = arith.constant 0 : index
    %c2 = arith.constant 2 : index
    %c0_17 = arith.constant 0 : index
    %c0_18 = arith.constant 0 : index
    %22 = vector.load %arg5[%c0_16, %c2, %c0_17, %c0_18] : memref<1x4x8x8xf32, #tpu.memory_space<vmem>>, vector<1x1x8x8xf32>
    %23 = vector.shape_cast %22 : vector<1x1x8x8xf32> to vector<8x8xf32>
    %24 = vector.shape_cast %21 : vector<8x8xf32> to vector<1x1x8x8xf32>
    tpu.vector_store %arg5[%c0_16, %c2, %c0_17, %c0_18], %24 {strides = array<i32>} : memref<1x4x8x8xf32, #tpu.memory_space<vmem>>, vector<1x1x8x8xf32>,
    %25 = vector.extract_strided_slice %6 {offsets = [0, 24], sizes = [8, 8], strides = [1, 1]} : vector<8x96xf32> to vector<8x8xf32>
    %cst_19 = arith.constant 0.353553385 : f32
    %26 = vector.broadcast %cst_19 : f32 to vector<8x8xf32>
    %27 = arith.mulf %25, %26 : vector<8x8xf32>
    %c0_20 = arith.constant 0 : index
    %c3 = arith.constant 3 : index
    %c0_21 = arith.constant 0 : index
    %c0_22 = arith.constant 0 : index
    %28 = vector.load %arg5[%c0_20, %c3, %c0_21, %c0_22] : memref<1x4x8x8xf32, #tpu.memory_space<vmem>>, vector<1x1x8x8xf32>
    %29 = vector.shape_cast %28 : vector<1x1x8x8xf32> to vector<8x8xf32>
    %30 = vector.shape_cast %27 : vector<8x8xf32> to vector<1x1x8x8xf32>
    tpu.vector_store %arg5[%c0_20, %c3, %c0_21, %c0_22], %30 {strides = array<i32>} : memref<1x4x8x8xf32, #tpu.memory_space<vmem>>, vector<1x1x8x8xf32>,
    %31 = vector.extract_strided_slice %6 {offsets = [0, 32], sizes = [8, 8], strides = [1, 1]} : vector<8x96xf32> to vector<8x8xf32>
    %c0_23 = arith.constant 0 : index
    %c0_24 = arith.constant 0 : index
    %c0_25 = arith.constant 0 : index
    %c0_26 = arith.constant 0 : index
    %32 = vector.load %arg6[%c0_23, %c0_24, %c0_25, %c0_26] : memref<1x4x8x8xf32, #tpu.memory_space<vmem>>, vector<1x1x8x8xf32>
    %33 = vector.shape_cast %32 : vector<1x1x8x8xf32> to vector<8x8xf32>
    %34 = vector.shape_cast %31 : vector<8x8xf32> to vector<1x1x8x8xf32>
    tpu.vector_store %arg6[%c0_23, %c0_24, %c0_25, %c0_26], %34 {strides = array<i32>} : memref<1x4x8x8xf32, #tpu.memory_space<vmem>>, vector<1x1x8x8xf32>,
    %35 = vector.extract_strided_slice %6 {offsets = [0, 40], sizes = [8, 8], strides = [1, 1]} : vector<8x96xf32> to vector<8x8xf32>
    %c0_27 = arith.constant 0 : index
    %c1_28 = arith.constant 1 : index
    %c0_29 = arith.constant 0 : index
    %c0_30 = arith.constant 0 : index
    %36 = vector.load %arg6[%c0_27, %c1_28, %c0_29, %c0_30] : memref<1x4x8x8xf32, #tpu.memory_space<vmem>>, vector<1x1x8x8xf32>
    %37 = vector.shape_cast %36 : vector<1x1x8x8xf32> to vector<8x8xf32>
    %38 = vector.shape_cast %35 : vector<8x8xf32> to vector<1x1x8x8xf32>
    tpu.vector_store %arg6[%c0_27, %c1_28, %c0_29, %c0_30], %38 {strides = array<i32>} : memref<1x4x8x8xf32, #tpu.memory_space<vmem>>, vector<1x1x8x8xf32>,
    %39 = vector.extract_strided_slice %6 {offsets = [0, 48], sizes = [8, 8], strides = [1, 1]} : vector<8x96xf32> to vector<8x8xf32>
    %c0_31 = arith.constant 0 : index
    %c2_32 = arith.constant 2 : index
    %c0_33 = arith.constant 0 : index
    %c0_34 = arith.constant 0 : index
    %40 = vector.load %arg6[%c0_31, %c2_32, %c0_33, %c0_34] : memref<1x4x8x8xf32, #tpu.memory_space<vmem>>, vector<1x1x8x8xf32>
    %41 = vector.shape_cast %40 : vector<1x1x8x8xf32> to vector<8x8xf32>
    %42 = vector.shape_cast %39 : vector<8x8xf32> to vector<1x1x8x8xf32>
    tpu.vector_store %arg6[%c0_31, %c2_32, %c0_33, %c0_34], %42 {strides = array<i32>} : memref<1x4x8x8xf32, #tpu.memory_space<vmem>>, vector<1x1x8x8xf32>,
    %43 = vector.extract_strided_slice %6 {offsets = [0, 56], sizes = [8, 8], strides = [1, 1]} : vector<8x96xf32> to vector<8x8xf32>
    %c0_35 = arith.constant 0 : index
    %c3_36 = arith.constant 3 : index
    %c0_37 = arith.constant 0 : index
    %c0_38 = arith.constant 0 : index
    %44 = vector.load %arg6[%c0_35, %c3_36, %c0_37, %c0_38] : memref<1x4x8x8xf32, #tpu.memory_space<vmem>>, vector<1x1x8x8xf32>
    %45 = vector.shape_cast %44 : vector<1x1x8x8xf32> to vector<8x8xf32>
    %46 = vector.shape_cast %43 : vector<8x8xf32> to vector<1x1x8x8xf32>
    tpu.vector_store %arg6[%c0_35, %c3_36, %c0_37, %c0_38], %46 {strides = array<i32>} : memref<1x4x8x8xf32, #tpu.memory_space<vmem>>, vector<1x1x8x8xf32>,
    %47 = vector.extract_strided_slice %6 {offsets = [0, 64], sizes = [8, 8], strides = [1, 1]} : vector<8x96xf32> to vector<8x8xf32>
    %c0_39 = arith.constant 0 : index
    %c0_40 = arith.constant 0 : index
    %c0_41 = arith.constant 0 : index
    %c0_42 = arith.constant 0 : index
    %48 = vector.load %arg7[%c0_39, %c0_40, %c0_41, %c0_42] : memref<1x4x8x8xf32, #tpu.memory_space<vmem>>, vector<1x1x8x8xf32>
    %49 = vector.shape_cast %48 : vector<1x1x8x8xf32> to vector<8x8xf32>
    %50 = vector.shape_cast %47 : vector<8x8xf32> to vector<1x1x8x8xf32>
    tpu.vector_store %arg7[%c0_39, %c0_40, %c0_41, %c0_42], %50 {strides = array<i32>} : memref<1x4x8x8xf32, #tpu.memory_space<vmem>>, vector<1x1x8x8xf32>,
    %51 = vector.extract_strided_slice %6 {offsets = [0, 72], sizes = [8, 8], strides = [1, 1]} : vector<8x96xf32> to vector<8x8xf32>
    %c0_43 = arith.constant 0 : index
    %c1_44 = arith.constant 1 : index
    %c0_45 = arith.constant 0 : index
    %c0_46 = arith.constant 0 : index
    %52 = vector.load %arg7[%c0_43, %c1_44, %c0_45, %c0_46] : memref<1x4x8x8xf32, #tpu.memory_space<vmem>>, vector<1x1x8x8xf32>
    %53 = vector.shape_cast %52 : vector<1x1x8x8xf32> to vector<8x8xf32>
    %54 = vector.shape_cast %51 : vector<8x8xf32> to vector<1x1x8x8xf32>
    tpu.vector_store %arg7[%c0_43, %c1_44, %c0_45, %c0_46], %54 {strides = array<i32>} : memref<1x4x8x8xf32, #tpu.memory_space<vmem>>, vector<1x1x8x8xf32>,
    %55 = vector.extract_strided_slice %6 {offsets = [0, 80], sizes = [8, 8], strides = [1, 1]} : vector<8x96xf32> to vector<8x8xf32>
    %c0_47 = arith.constant 0 : index
    %c2_48 = arith.constant 2 : index
    %c0_49 = arith.constant 0 : index
    %c0_50 = arith.constant 0 : index
    %56 = vector.load %arg7[%c0_47, %c2_48, %c0_49, %c0_50] : memref<1x4x8x8xf32, #tpu.memory_space<vmem>>, vector<1x1x8x8xf32>
    %57 = vector.shape_cast %56 : vector<1x1x8x8xf32> to vector<8x8xf32>
    %58 = vector.shape_cast %55 : vector<8x8xf32> to vector<1x1x8x8xf32>
    tpu.vector_store %arg7[%c0_47, %c2_48, %c0_49, %c0_50], %58 {strides = array<i32>} : memref<1x4x8x8xf32, #tpu.memory_space<vmem>>, vector<1x1x8x8xf32>,
    %59 = vector.extract_strided_slice %6 {offsets = [0, 88], sizes = [8, 8], strides = [1, 1]} : vector<8x96xf32> to vector<8x8xf32>
    %c0_51 = arith.constant 0 : index
    %c3_52 = arith.constant 3 : index
    %c0_53 = arith.constant 0 : index
    %c0_54 = arith.constant 0 : index
    %60 = vector.load %arg7[%c0_51, %c3_52, %c0_53, %c0_54] : memref<1x4x8x8xf32, #tpu.memory_space<vmem>>, vector<1x1x8x8xf32>
    %61 = vector.shape_cast %60 : vector<1x1x8x8xf32> to vector<8x8xf32>
    %62 = vector.shape_cast %59 : vector<8x8xf32> to vector<1x1x8x8xf32>
    tpu.vector_store %arg7[%c0_51, %c3_52, %c0_53, %c0_54], %62 {strides = array<i32>} : memref<1x4x8x8xf32, #tpu.memory_space<vmem>>, vector<1x1x8x8xf32>,
    return
  }
  func.func @transform_0(%arg0: i32, %arg1: i32) -> (i32, i32, i32) {
    %c0_i32 = arith.constant 0 : i32
    %c0_i32_0 = arith.constant 0 : i32
    return %arg0, %arg1, %c0_i32 : i32, i32, i32
  }
  func.func @transform_1(%arg0: i32, %arg1: i32) -> (i32, i32) {
    %c0_i32 = arith.constant 0 : i32
    %c0_i32_0 = arith.constant 0 : i32
    %c0_i32_1 = arith.constant 0 : i32
    return %c0_i32, %c0_i32_0 : i32, i32
  }
  func.func @transform_2(%arg0: i32, %arg1: i32) -> (i32, i32) {
    %c0_i32 = arith.constant 0 : i32
    %c0_i32_0 = arith.constant 0 : i32
    %c0_i32_1 = arith.constant 0 : i32
    return %c0_i32, %c0_i32_0 : i32, i32
  }
  func.func @transform_3(%arg0: i32, %arg1: i32) -> (i32, i32, i32, i32) {
    %c0_i32 = arith.constant 0 : i32
    %c0_i32_0 = arith.constant 0 : i32
    %c0_i32_1 = arith.constant 0 : i32
    return %arg0, %c0_i32, %arg1, %c0_i32_0 : i32, i32, i32, i32
  }
  func.func @transform_4(%arg0: i32, %arg1: i32) -> (i32, i32, i32, i32) {
    %c0_i32 = arith.constant 0 : i32
    %c0_i32_0 = arith.constant 0 : i32
    %c0_i32_1 = arith.constant 0 : i32
    return %arg0, %c0_i32, %arg1, %c0_i32_0 : i32, i32, i32, i32
  }
  func.func @transform_5(%arg0: i32, %arg1: i32) -> (i32, i32, i32, i32) {
    %c0_i32 = arith.constant 0 : i32
    %c0_i32_0 = arith.constant 0 : i32
    %c0_i32_1 = arith.constant 0 : i32
    return %arg0, %c0_i32, %arg1, %c0_i32_0 : i32, i32, i32, i32
  }
}

</mosaic_0001>

<llo_original>
// kernel: tpu_custom_call.1
$region0: #{tpu_custom_call.1}
  #allocation0 [shape = 'u32[]', space=smem, size = 0x4, offset = 0x4, fixed_abs, tag = 'smem constant byte address 0x4 - core index']
  #allocation1 [shape = 'u32[144,128]{1,0:T(1,128)}', space=vmem, size = 0x12000, scoped, tag = 'internal scratch']
  %s0 = inlined_call_operand.hbm [shape: f32[2,8,32], index: 0, kind: input, shape index: {}]
  %s1 = inlined_call_operand.hbm [shape: f32[32,96], index: 1, kind: input, shape index: {}]
  %s2 = inlined_call_operand.vmem [shape: f32[1,96], index: 2, kind: input, shape index: {}]
  %s3 = inlined_call_operand.hbm [shape: f32[2,4,8,8], index: 3, kind: output, shape index: {0}]
  %s4 = inlined_call_operand.hbm [shape: f32[2,4,8,8], index: 4, kind: output, shape index: {1}]
  %s5 = inlined_call_operand.hbm [shape: f32[2,4,8,8], index: 5, kind: output, shape index: {2}]
  %6 = xla_tuple %s3, %s4, %s5
  %s7 = sld [smem:[#allocation0]]
  $region69: #{tpu_custom_call.1} parent=0
    _
  %s9 = ssub.s32 1, %s7
  %s10 = scalar_select 0, %s9, %s7
  $region1: #{tpu_custom_call.1} parent=0
    #allocation2 [shape = 'u8[8192]{0}', space=vmem, size = 0x2000, scoped, tag = 'input window, operand 0']
    #allocation3 [shape = 's32[2]{0}', space=sflag, size = 0x8, scoped, tag = 'scoped memory for tpu_custom_call.1']
    #allocation4 [shape = 's32[2]{0}', space=sflag, size = 0x8, scoped, tag = 'scoped memory for tpu_custom_call.1']
    #allocation5 [shape = 'u8[16384]{0}', space=vmem, size = 0x4000, scoped, tag = 'input window, operand 1, single buffered']
    #allocation6 [shape = 's32[1]{0}', space=sflag, size = 0x4, scoped, tag = 'scoped memory for tpu_custom_call.1']
    #allocation7 [shape = 'u8[32768]{0}', space=vmem, size = 0x8000, scoped, tag = 'output window, operand 0']
    #allocation8 [shape = 'u8[32768]{0}', space=vmem, size = 0x8000, scoped, tag = 'output window, operand 1']
    #allocation9 [shape = 's32[2]{0}', space=sflag, size = 0x8, scoped, tag = 'scoped memory for tpu_custom_call.1']
    #allocation10 [shape = 'u8[32768]{0}', space=vmem, size = 0x8000, scoped, tag = 'output window, operand 2']
    %11 = vsyncpa [#allocation3], 0
    %s12 = scalar_lea.sflag [#allocation3], 1
    %13 = vsyncpa %s12, 0
    %14 = vsyncpa [#allocation6], 0
    %15 = vsyncpa [#allocation4], 0
    %s16 = scalar_lea.sflag [#allocation4], 1
    %17 = vsyncpa %s16, 0
    %18 = vsyncpa [#allocation9], 0
    %s19 = scalar_lea.sflag [#allocation9], 1
    %20 = vsyncpa %s19, 0
    loop: start=0, step=1, limit=4
    $region2: #{tpu_custom_call.1} parent=1 // loop_pre_header
      _
    $region3: #{tpu_custom_call.1} parent=1 // loop_header
      %s22 = sphi 0, %s26
      %p23 = scmp.ge.s32.totalorder %s22, 4
      %s29 = sphi 0, %s41
      %s30 = sphi 0, %s37
      %s31 = sphi 0, %s29
      %s32 = sphi 0, %s30
      %s33 = sphi 0, %s31
      %s34 = sphi 0, %s32
      %s46 = sphi 0, %s48
      %s49 = sphi 0, %s46
      %s50 = sphi 0, %s49
      %s66 = sphi 0, %s50
      %s70 = sphi 0, %s70
      %s72 = sphi 0, %s70
      %s73 = sphi 0, %s72
      %s87 = sphi 0, %s73
      %s91 = sphi 0, %s91
      %s93 = sphi 0, %s91
      %s94 = sphi 0, %s93
      %s108 = sphi 0, %s94
      %s116 = sphi 0, %s118
      %s119 = sphi 0, %s116
      %s120 = sphi 0, %s119
      %s136 = sphi 0, %s120
      %s144 = sphi 0, %s146
      %s147 = sphi 0, %s144
      %s148 = sphi 0, %s147
      %s164 = sphi 0, %s148
      %s172 = sphi 0, %s174
      %s175 = sphi 0, %s172
      %s176 = sphi 0, %s175
      %s192 = sphi 0, %s176
    $region4: #{tpu_custom_call.1} parent=1 // loop_header_branch
      %25 = sbr.rel (%p23) target = $region8
    $region5: #{tpu_custom_call.1} parent=1 // loop_body
      %s27 = ssub.s32 %s22, 1
      %s28 = ssub.s32 %s22, 2
      %s35 = sadd.s32 1, %s30
      %p36 = scmp.ge.s32.totalorder %s35, 1
      %s37 = scalar_select %p36, 0, %s35
      %s38 = sadd.s32 1, %s29
      %s39 = scalar_select %p36, %s38, %s29
      %p40 = scmp.ge.s32.totalorder %s39, 2
      %s41 = scalar_select %p40, 0, %s39
      %s42 = ssub.s32 %s29, %s41
      %s43 = ssub.s32 %s30, %s37
      %s44 = sor.u32 %s42, %s43
      %p45 = scmp.eq.s32.totalorder %s44, 0
      %s47 = sadd.s32 %s46, 1
      %s48 = scalar_select %p45, %s46, %s47
      %p51 = pneg %p45
      %p52 = scmp.eq.s32.totalorder %s22, 1
      %p53 = por %p51, %p52
      %p54 = scmp.ne.s32.totalorder %s46, %s49
      %p55 = scmp.eq.s32.totalorder %s22, 0
      %p56 = por %p54, %p55
      %p57 = scmp.ne.s32.totalorder %s46, %s49
      %p58 = scmp.eq.s32.totalorder %s27, 1
      %p59 = por %p57, %p58
      %p60 = scmp.ne.s32.totalorder %s49, %s50
      %p61 = scmp.eq.s32.totalorder %s27, 0
      %p62 = por %p60, %p61
      %p63 = scmp.ne.s32.totalorder %s49, %s50
      %p64 = scmp.eq.s32.totalorder %s28, 1
      %p65 = por %p63, %p64
      %p67 = scmp.ne.s32.totalorder %s50, %s66
      %p68 = scmp.eq.s32.totalorder %s28, 0
      %p69 = por %p67, %p68
      %s71 = sadd.s32 %s70, 1
      %p74 = scmp.eq.s32.totalorder %s22, 1
      %p75 = scmp.ne.s32.totalorder %s70, %s72
      %p76 = scmp.eq.s32.totalorder %s22, 0
      %p77 = por %p75, %p76
      %p78 = scmp.ne.s32.totalorder %s70, %s72
      %p79 = scmp.eq.s32.totalorder %s27, 1
      %p80 = por %p78, %p79
      %p81 = scmp.ne.s32.totalorder %s72, %s73
      %p82 = scmp.eq.s32.totalorder %s27, 0
      %p83 = por %p81, %p82
      %p84 = scmp.ne.s32.totalorder %s72, %s73
      %p85 = scmp.eq.s32.totalorder %s28, 1
      %p86 = por %p84, %p85
      %p88 = scmp.ne.s32.totalorder %s73, %s87
      %p89 = scmp.eq.s32.totalorder %s28, 0
      %p90 = por %p88, %p89
      %s92 = sadd.s32 %s91, 1
      %p95 = scmp.eq.s32.totalorder %s22, 1
      %p96 = scmp.ne.s32.totalorder %s91, %s93
      %p97 = scmp.eq.s32.totalorder %s22, 0
      %p98 = por %p96, %p97
      %p99 = scmp.ne.s32.totalorder %s91, %s93
      %p100 = scmp.eq.s32.totalorder %s27, 1
      %p101 = por %p99, %p100
      %p102 = scmp.ne.s32.totalorder %s93, %s94
      %p103 = scmp.eq.s32.totalorder %s27, 0
      %p104 = por %p102, %p103
      %p105 = scmp.ne.s32.totalorder %s93, %s94
      %p106 = scmp.eq.s32.totalorder %s28, 1
      %p107 = por %p105, %p106
      %p109 = scmp.ne.s32.totalorder %s94, %s108
      %p110 = scmp.eq.s32.totalorder %s28, 0
      %p111 = por %p109, %p110
      %s112 = ssub.s32 %s29, %s41
      %s113 = ssub.s32 %s30, %s37
      %s114 = sor.u32 %s112, %s113
      %p115 = scmp.eq.s32.totalorder %s114, 0
      %s117 = sadd.s32 %s116, 1
      %s118 = scalar_select %p115, %s116, %s117
      %p121 = pneg %p115
      %p122 = scmp.eq.s32.totalorder %s22, 1
      %p123 = por %p121, %p122
      %p124 = scmp.ne.s32.totalorder %s116, %s119
      %p125 = scmp.eq.s32.totalorder %s22, 0
      %p126 = por %p124, %p125
      %p127 = scmp.ne.s32.totalorder %s116, %s119
      %p128 = scmp.eq.s32.totalorder %s27, 1
      %p129 = por %p127, %p128
      %p130 = scmp.ne.s32.totalorder %s119, %s120
      %p131 = scmp.eq.s32.totalorder %s27, 0
      %p132 = por %p130, %p131
      %p133 = scmp.ne.s32.totalorder %s119, %s120
      %p134 = scmp.eq.s32.totalorder %s28, 1
      %p135 = por %p133, %p134
      %p137 = scmp.ne.s32.totalorder %s120, %s136
      %p138 = scmp.eq.s32.totalorder %s28, 0
      %p139 = por %p137, %p138
      %s140 = ssub.s32 %s29, %s41
      %s141 = ssub.s32 %s30, %s37
      %s142 = sor.u32 %s140, %s141
      %p143 = scmp.eq.s32.totalorder %s142, 0
      %s145 = sadd.s32 %s144, 1
      %s146 = scalar_select %p143, %s144, %s145
      %p149 = pneg %p143
      %p150 = scmp.eq.s32.totalorder %s22, 1
      %p151 = por %p149, %p150
      %p152 = scmp.ne.s32.totalorder %s144, %s147
      %p153 = scmp.eq.s32.totalorder %s22, 0
      %p154 = por %p152, %p153
      %p155 = scmp.ne.s32.totalorder %s144, %s147
      %p156 = scmp.eq.s32.totalorder %s27, 1
      %p157 = por %p155, %p156
      %p158 = scmp.ne.s32.totalorder %s147, %s148
      %p159 = scmp.eq.s32.totalorder %s27, 0
      %p160 = por %p158, %p159
      %p161 = scmp.ne.s32.totalorder %s147, %s148
      %p162 = scmp.eq.s32.totalorder %s28, 1
      %p163 = por %p161, %p162
      %p165 = scmp.ne.s32.totalorder %s148, %s164
      %p166 = scmp.eq.s32.totalorder %s28, 0
      %p167 = por %p165, %p166
      %s168 = ssub.s32 %s29, %s41
      %s169 = ssub.s32 %s30, %s37
      %s170 = sor.u32 %s168, %s169
      %p171 = scmp.eq.s32.totalorder %s170, 0
      %s173 = sadd.s32 %s172, 1
      %s174 = scalar_select %p171, %s172, %s173
      %p177 = pneg %p171
      %p178 = scmp.eq.s32.totalorder %s22, 1
      %p179 = por %p177, %p178
      %p180 = scmp.ne.s32.totalorder %s172, %s175
      %p181 = scmp.eq.s32.totalorder %s22, 0
      %p182 = por %p180, %p181
      %p183 = scmp.ne.s32.totalorder %s172, %s175
      %p184 = scmp.eq.s32.totalorder %s27, 1
      %p185 = por %p183, %p184
      %p186 = scmp.ne.s32.totalorder %s175, %s176
      %p187 = scmp.eq.s32.totalorder %s27, 0
      %p188 = por %p186, %p187
      %p189 = scmp.ne.s32.totalorder %s175, %s176
      %p190 = scmp.eq.s32.totalorder %s28, 1
      %p191 = por %p189, %p190
      %p193 = scmp.ne.s32.totalorder %s176, %s192
      %p194 = scmp.eq.s32.totalorder %s28, 0
      %p195 = por %p193, %p194
      %p196 = scmp.le.s32.totalorder 1, %s22
      %p197 = scmp.lt.s32.totalorder %s22, 3
      %p198 = pnand %p196, %p197
      %p199 = pneg %p198
      // Predicated region
      $region9: #{tpu_custom_call.1} parent=5 // pred_check
        _
      $region10: #{tpu_custom_call.1} parent=5 // pred_check_branch
        %201 = sbr.rel (%p198) target = $region12
      $region11: #{tpu_custom_call.1} parent=5 // pred_region
        %s202 = ssub.s32 %s22, 1
        // Predicated region
        $region13: #{tpu_custom_call.1} parent=11 // pred_check
          %p203 = pneg %p83
        $region14: #{tpu_custom_call.1} parent=11 // pred_check_branch
          %205 = sbr.rel (%p203) target = $region16
        $region15: #{tpu_custom_call.1} parent=11 // pred_region
          %s207 = ssub.s32 512, 512
          %208 = vsyncadd [#allocation6], %s207
          %s209 = sshll.u32 [#allocation5], 4
          %s210 = int_to_ptr.vmem [resolvable:$true] %s209
          %215 = dma.hbm_to_vmem [thread:$0]  %s1, 512, %s210, [#allocation6], 128, 128, 8
        $region16: #{tpu_custom_call.1} parent=11 // pred_fallthru
          _
        // Predicated region
        $region17: #{tpu_custom_call.1} parent=11 // pred_check
          %p216 = pneg %p104
        $region18: #{tpu_custom_call.1} parent=11 // pred_check_branch
          %218 = sbr.rel (%p216) target = $region20
        $region19: #{tpu_custom_call.1} parent=11 // pred_region
          _
        $region20: #{tpu_custom_call.1} parent=11 // pred_fallthru
          _
      $region12: #{tpu_custom_call.1} parent=5 // pred_fallthru
        _
      %p219 = scmp.lt.s32.totalorder %s22, 2
      // Predicated region
      $region21: #{tpu_custom_call.1} parent=5 // pred_check
        %p220 = pneg %p219
      $region22: #{tpu_custom_call.1} parent=5 // pred_check_branch
        %222 = sbr.rel (%p220) target = $region24
      $region23: #{tpu_custom_call.1} parent=5 // pred_region
        // Predicated region
        $region25: #{tpu_custom_call.1} parent=23 // pred_check
          %p223 = pneg %p56
        $region26: #{tpu_custom_call.1} parent=23 // pred_check_branch
          %225 = sbr.rel (%p223) target = $region28
        $region27: #{tpu_custom_call.1} parent=23 // pred_region
          %s226 = sand.u32 %s46, 1
          %s227 = scalar_lea.sflag [#allocation3], %s226
          %s228 = sand.u32 %s46, 1
          %s229 = smul.addr %s228, 8
          %s230 = scalar_lea.vmem [#allocation2], %s229
          %s232 = ssub.s32 128, 128
          %233 = vsyncadd %s227, %s232
          %s234 = sadd.s32 %s30, %s29
          %s235 = smul.addr %s234, 128
          %s236 = scalar_lea.hbm %s0, %s235
          %s238 = sshll.u32 %s230, 4
          %s239 = int_to_ptr.vmem [resolvable:$true] %s238
          %241 = dma.hbm_to_vmem [thread:$0]  %s236, 128, %s239, %s227
        $region28: #{tpu_custom_call.1} parent=23 // pred_fallthru
          _
      $region24: #{tpu_custom_call.1} parent=5 // pred_fallthru
        _
      %p242 = scmp.le.s32.totalorder 1, %s22
      %p243 = scmp.lt.s32.totalorder %s22, 3
      %p244 = pnand %p242, %p243
      %p245 = pneg %p244
      // Predicated region
      $region29: #{tpu_custom_call.1} parent=5 // pred_check
        _
      $region30: #{tpu_custom_call.1} parent=5 // pred_check_branch
        %247 = sbr.rel (%p244) target = $region32
      $region31: #{tpu_custom_call.1} parent=5 // pred_region
        %s248 = ssub.s32 %s22, 1
        %s249 = sand.u32 %s49, 1
        %s250 = scalar_lea.sflag [#allocation3], %s249
        %s251 = sand.u32 %s49, 1
        %s252 = smul.addr %s251, 8
        %s253 = scalar_lea.vmem [#allocation2], %s252
        // Predicated region
        $region33: #{tpu_custom_call.1} parent=31 // pred_check
          %p254 = pneg %p62
        $region34: #{tpu_custom_call.1} parent=31 // pred_check_branch
          %256 = sbr.rel (%p254) target = $region36
        $region35: #{tpu_custom_call.1} parent=31 // pred_region
          %257 = dma.done %s250, 128
        $region36: #{tpu_custom_call.1} parent=31 // pred_fallthru
          _
        // Predicated region
        $region37: #{tpu_custom_call.1} parent=31 // pred_check
          %p258 = pneg %p83
        $region38: #{tpu_custom_call.1} parent=31 // pred_check_branch
          %260 = sbr.rel (%p258) target = $region40
        $region39: #{tpu_custom_call.1} parent=31 // pred_region
          %261 = dma.done [#allocation6], 512
        $region40: #{tpu_custom_call.1} parent=31 // pred_fallthru
          _
        %s262 = sand.u32 %s49, 1
        %s263 = scalar_lea.sflag [#allocation3], %s262
        %s264 = sand.u32 %s49, 1
        %s265 = smul.addr %s264, 8
        %s266 = scalar_lea.vmem [#allocation2], %s265
        %p267 = pneg %p62
        %p268 = pneg %p59
        %p269 = pneg %p83
        %p270 = pneg %p80
        %p271 = pneg %p104
        %p272 = pneg %p101
        %p273 = pneg %p132
        %p274 = pneg %p129
        %s275 = sand.u32 %s119, 1
        %s276 = scalar_lea.sflag [#allocation4], %s275
        %s277 = sand.u32 %s119, 1
        %s278 = smul.addr %s277, 32
        %s279 = scalar_lea.vmem [#allocation7], %s278
        %p280 = pneg %p160
        %p281 = pneg %p157
        %s282 = sand.u32 %s27, 1
        %s283 = scalar_lea.sflag [#allocation9], %s282
        %s284 = sand.u32 %s147, 1
        %s285 = smul.addr %s284, 32
        %s286 = scalar_lea.vmem [#allocation8], %s285
        %p287 = pneg %p188
        %p288 = pneg %p185
        %s289 = sand.u32 %s27, 1
        %s290 = scalar_lea.sflag [#allocation9], %s289
        %s291 = sand.u32 %s175, 1
        %s292 = smul.addr %s291, 32
        %s293 = scalar_lea.vmem [#allocation10], %s292
        %v294 = vld [vmem:[%s253] sm:$0xff]
        %v295 = vld [vmem:[#allocation5] sm:$0xff]
        %v296 = vld [vmem:[#allocation5 + $0x8] sm:$0xff]
        %v297 = vld [vmem:[#allocation5 + $0x10] sm:$0xff]
        %v298 = vld [vmem:[#allocation5 + $0x18] sm:$0xff]
        %v299 = vld [vmem:[%s2] sm:$0x1]
        %v301 = vlaneseq
        %v302 = vshrl.u32 %v301, 7
        %v303 = vsub.s32 0, %v302
        %v304 = vrot.slane %v299, %v303
        %vm306 = vcmask 261120
        %v308 = vsel %vm306, %v294, 0
        %310 = vmatprep.subr.mxu0 0.0
        %311 = vmatpush1.msra.mxu0 %v295
        %312 = vmatprep.subr.mxu0 0.0
        %313 = vmatpush1.msra.mxu0 %v296
        %314 = vmatprep.subr.mxu0 0.0
        %315 = vmatpush1.msra.mxu0 %v297
        %316 = vmatprep.subr.mxu0 0.0
        %317 = vmatpush1.msra.mxu0 %v298
        %318 = vmatprep.subr.mxu0 0.0
        %319 = vmatpush1.msra.mxu0 0.0
        %320 = vmatprep.subr.mxu0 0.0
        %321 = vmatpush1.msra.mxu0 0.0
        %322 = vmatprep.subr.mxu0 0.0
        %323 = vmatpush1.msra.mxu0 0.0
        %324 = vmatprep.subr.mxu0 0.0
        %325 = vmatpush1.msra.mxu0 0.0
        %326 = vmatprep.subr.mxu0 0.0
        %327 = vmatpush1.msra.mxu0 0.0
        %328 = vmatprep.subr.mxu0 0.0
        %329 = vmatpush1.msra.mxu0 0.0
        %330 = vmatprep.subr.mxu0 0.0
        %331 = vmatpush1.msra.mxu0 0.0
        %332 = vmatprep.subr.mxu0 0.0
        %333 = vmatpush1.msra.mxu0 0.0
        %334 = vmatprep.subr.mxu0 0.0
        %335 = vmatpush1.msra.mxu0 0.0
        %336 = vmatprep.subr.mxu0 0.0
        %337 = vmatpush1.msra.mxu0 0.0
        %338 = vmatprep.subr.mxu0 0.0
        %339 = vmatpush1.msra.mxu0 0.0
        %340 = vmatprep.subr.mxu0 0.0
        %341 = vmatpush1.msra.mxu0 0.0
        %342 = vmatprep.subr.mxu0 0.0
        %343 = vmatpush1.msra.mxu0 0.0
        %344 = vmatprep.subr.mxu0 0.0
        %345 = vmatpush1.msra.mxu0 0.0
        %346 = vmatprep.subr.mxu0 0.0
        %347 = vmatpush1.msra.mxu0 0.0
        %348 = vmatprep.subr.mxu0 0.0
        %349 = vmatpush1.msra.mxu0 0.0
        %350 = vmatprep.subr.mxu0 0.0
        %351 = vmatpush1.msra.mxu0 0.0
        %352 = vmatprep.subr.mxu0 0.0
        %353 = vmatpush1.msra.mxu0 0.0
        %354 = vmatprep.subr.mxu0 0.0
        %355 = vmatpush1.msra.mxu0 0.0
        %356 = vmatprep.subr.mxu0 0.0
        %357 = vmatpush1.msra.mxu0 0.0
        %358 = vmatprep.subr.mxu0 0.0
        %359 = vmatpush1.msra.mxu0 0.0
        %360 = vmatprep.subr.mxu0 0.0
        %361 = vmatpush1.msra.mxu0 0.0
        %362 = vmatprep.subr.mxu0 0.0
        %363 = vmatpush1.msra.mxu0 0.0
        %364 = vmatprep.subr.mxu0 0.0
        %365 = vmatpush1.msra.mxu0 0.0
        %366 = vmatprep.subr.mxu0 0.0
        %367 = vmatpush1.msra.mxu0 0.0
        %368 = vmatprep.subr.mxu0 0.0
        %369 = vmatpush1.msra.mxu0 0.0
        %370 = vmatprep.subr.mxu0 0.0
        %371 = vmatpush1.msra.mxu0 0.0
        %372 = vmatprep.subr.mxu0 0.0
        %373 = vmatpush1.msra.mxu0 0.0
        %374 = vmatprep.mubr.f32.mxu0 0.0
        %375 = vmatmul.mubr.f32.gmra.mrb[0].mxu0 %v308
        %v376 = vpop.f32.mrb[0].mxu0
        %v377 = vadd.f32 %v304, %v376
        %v378 = vpop.f32.mrb[0].mxu0
        %379 = vdwg.mxu0
        %v380 = vmul.f32 %v377, 0.35355338
        %vm381 = vcmask 64512
        %382 = vst.msk [vmem:[%s279] sm:$0xff] %vm381, %v380
        %384 = vrot.lane.b32.xlu0 %v380, 120
        %v385 = vpop.permute.xlu0 %384
        %s387 = scalar_lea.vmem %s279, 8 [#allocation7]
        %388 = vst.msk [vmem:[%s387] sm:$0xff] %vm381, %v385
        %389 = vrot.lane.b32.xlu0 %v380, 112
        %v390 = vpop.permute.xlu0 %389
        %s392 = scalar_lea.vmem %s279, 16 [#allocation7]
        %393 = vst.msk [vmem:[%s392] sm:$0xff] %vm381, %v390
        %394 = vrot.lane.b32.xlu0 %v380, 104
        %v395 = vpop.permute.xlu0 %394
        %s397 = scalar_lea.vmem %s279, 24 [#allocation7]
        %398 = vst.msk [vmem:[%s397] sm:$0xff] %vm381, %v395
        %400 = vrot.lane.b32.xlu0 %v377, 96
        %v401 = vpop.permute.xlu0 %400
        %403 = vst.msk [vmem:[%s286] sm:$0xff] %vm381, %v401
        %404 = vrot.lane.b32.xlu0 %v377, 88
        %v405 = vpop.permute.xlu0 %404
        %s407 = scalar_lea.vmem %s286, 8 [#allocation8]
        %408 = vst.msk [vmem:[%s407] sm:$0xff] %vm381, %v405
        %409 = vrot.lane.b32.xlu0 %v377, 80
        %v410 = vpop.permute.xlu0 %409
        %s412 = scalar_lea.vmem %s286, 16 [#allocation8]
        %413 = vst.msk [vmem:[%s412] sm:$0xff] %vm381, %v410
        %414 = vrot.lane.b32.xlu0 %v377, 72
        %v415 = vpop.permute.xlu0 %414
        %s417 = scalar_lea.vmem %s286, 24 [#allocation8]
        %418 = vst.msk [vmem:[%s417] sm:$0xff] %vm381, %v415
        %419 = vrot.lane.b32.xlu0 %v377, 64
        %v420 = vpop.permute.xlu0 %419
        %422 = vst.msk [vmem:[%s293] sm:$0xff] %vm381, %v420
        %423 = vrot.lane.b32.xlu0 %v377, 56
        %v424 = vpop.permute.xlu0 %423
        %s426 = scalar_lea.vmem %s293, 8 [#allocation10]
        %427 = vst.msk [vmem:[%s426] sm:$0xff] %vm381, %v424
        %428 = vrot.lane.b32.xlu0 %v377, 48
        %v429 = vpop.permute.xlu0 %428
        %s431 = scalar_lea.vmem %s293, 16 [#allocation10]
        %432 = vst.msk [vmem:[%s431] sm:$0xff] %vm381, %v429
        %433 = vrot.lane.b32.xlu0 %v377, 40
        %v434 = vpop.permute.xlu0 %433
        %s436 = scalar_lea.vmem %s293, 24 [#allocation10]
        %437 = vst.msk [vmem:[%s436] sm:$0xff] %vm381, %v434
        %s438 = sand.u32 %s119, 1
        %s439 = scalar_lea.sflag [#allocation4], %s438
        %s440 = sand.u32 %s119, 1
        %s441 = smul.addr %s440, 32
        %s442 = scalar_lea.vmem [#allocation7], %s441
        %s443 = sand.u32 %s27, 1
        %s444 = scalar_lea.sflag [#allocation9], %s443
        %s445 = sand.u32 %s147, 1
        %s446 = smul.addr %s445, 32
        %s447 = scalar_lea.vmem [#allocation8], %s446
        %s448 = sand.u32 %s27, 1
        %s449 = scalar_lea.sflag [#allocation9], %s448
        %s450 = sand.u32 %s175, 1
        %s451 = smul.addr %s450, 32
        %s452 = scalar_lea.vmem [#allocation10], %s451
        // Predicated region
        $region41: #{tpu_custom_call.1} parent=31 // pred_check
          %p453 = pneg %p129
        $region42: #{tpu_custom_call.1} parent=31 // pred_check_branch
          %455 = sbr.rel (%p453) target = $region44
        $region43: #{tpu_custom_call.1} parent=31 // pred_region
          %s457 = ssub.s32 512, 512
          %458 = vsyncadd %s439, %s457
          %s459 = smul.addr %s31, 4
          %s460 = sadd.s32 %s32, %s459
          %s461 = smul.addr %s460, 128
          %s462 = scalar_lea.hbm %s3, %s461
          %s463 = sshll.u32 %s442, 4
          %s464 = int_to_ptr.vmem [resolvable:$true] %s463
          %469 = dma.vmem_to_hbm [thread:$0]  %s464, 512, %s462, %s439, 128, 128, 8
        $region44: #{tpu_custom_call.1} parent=31 // pred_fallthru
          _
        // Predicated region
        $region45: #{tpu_custom_call.1} parent=31 // pred_check
          %p470 = pneg %p157
        $region46: #{tpu_custom_call.1} parent=31 // pred_check_branch
          %472 = sbr.rel (%p470) target = $region48
        $region47: #{tpu_custom_call.1} parent=31 // pred_region
          %s474 = ssub.s32 512, 512
          %475 = vsyncadd %s444, %s474
          %s476 = smul.addr %s31, 4
          %s477 = sadd.s32 %s32, %s476
          %s478 = smul.addr %s477, 128
          %s479 = scalar_lea.hbm %s4, %s478
          %s480 = sshll.u32 %s447, 4
          %s481 = int_to_ptr.vmem [resolvable:$true] %s480
          %486 = dma.vmem_to_hbm [thread:$0]  %s481, 512, %s479, %s444, 128, 128, 8
        $region48: #{tpu_custom_call.1} parent=31 // pred_fallthru
          _
        // Predicated region
        $region49: #{tpu_custom_call.1} parent=31 // pred_check
          %p487 = pneg %p185
        $region50: #{tpu_custom_call.1} parent=31 // pred_check_branch
          %489 = sbr.rel (%p487) target = $region52
        $region51: #{tpu_custom_call.1} parent=31 // pred_region
          %s491 = ssub.s32 512, 512
          %492 = vsyncadd %s449, %s491
          %s493 = smul.addr %s31, 4
          %s494 = sadd.s32 %s32, %s493
          %s495 = smul.addr %s494, 128
          %s496 = scalar_lea.hbm %s5, %s495
          %s497 = sshll.u32 %s452, 4
          %s498 = int_to_ptr.vmem [resolvable:$true] %s497
          %503 = dma.vmem_to_hbm [thread:$0]  %s498, 512, %s496, %s449, 128, 128, 8
        $region52: #{tpu_custom_call.1} parent=31 // pred_fallthru
          _
      $region32: #{tpu_custom_call.1} parent=5 // pred_fallthru
        _
      %p504 = scmp.le.s32.totalorder 2, %s22
      // Predicated region
      $region53: #{tpu_custom_call.1} parent=5 // pred_check
        %p505 = pneg %p504
      $region54: #{tpu_custom_call.1} parent=5 // pred_check_branch
        %507 = sbr.rel (%p505) target = $region56
      $region55: #{tpu_custom_call.1} parent=5 // pred_region
        %s508 = ssub.s32 %s22, 2
        // Predicated region
        $region57: #{tpu_custom_call.1} parent=55 // pred_check
          %p509 = pneg %p135
        $region58: #{tpu_custom_call.1} parent=55 // pred_check_branch
          %511 = sbr.rel (%p509) target = $region60
        $region59: #{tpu_custom_call.1} parent=55 // pred_region
          %s512 = sand.u32 %s120, 1
          %s513 = scalar_lea.sflag [#allocation4], %s512
          %s514 = sand.u32 %s120, 1
          %s515 = smul.addr %s514, 32
          %s516 = scalar_lea.vmem [#allocation7], %s515
          %517 = dma.done %s513, 512
        $region60: #{tpu_custom_call.1} parent=55 // pred_fallthru
          _
        // Predicated region
        $region61: #{tpu_custom_call.1} parent=55 // pred_check
          %p518 = pneg %p163
        $region62: #{tpu_custom_call.1} parent=55 // pred_check_branch
          %520 = sbr.rel (%p518) target = $region64
        $region63: #{tpu_custom_call.1} parent=55 // pred_region
          %s521 = sand.u32 %s28, 1
          %s522 = scalar_lea.sflag [#allocation9], %s521
          %s523 = sand.u32 %s148, 1
          %s524 = smul.addr %s523, 32
          %s525 = scalar_lea.vmem [#allocation8], %s524
          %526 = dma.done %s522, 512
        $region64: #{tpu_custom_call.1} parent=55 // pred_fallthru
          _
        // Predicated region
        $region65: #{tpu_custom_call.1} parent=55 // pred_check
          %p527 = pneg %p191
        $region66: #{tpu_custom_call.1} parent=55 // pred_check_branch
          %529 = sbr.rel (%p527) target = $region68
        $region67: #{tpu_custom_call.1} parent=55 // pred_region
          %s530 = sand.u32 %s28, 1
          %s531 = scalar_lea.sflag [#allocation9], %s530
          %s532 = sand.u32 %s176, 1
          %s533 = smul.addr %s532, 32
          %s534 = scalar_lea.vmem [#allocation10], %s533
          %535 = dma.done %s531, 512
        $region68: #{tpu_custom_call.1} parent=55 // pred_fallthru
          _
      $region56: #{tpu_custom_call.1} parent=5 // pred_fallthru
        _
    $region6: #{tpu_custom_call.1} parent=1 // loop_footer
      %s26 = sadd.s32 1, %s22
    $region7: #{tpu_custom_call.1} parent=1 // loop_footer_branch
      %21 = sbr.rel target = $region3
    $region8: #{tpu_custom_call.1} parent=1 // loop_exit
      _
    %536 = vsyncpa [#allocation3], 1
    %s537 = scalar_lea.sflag [#allocation3], 1
    %538 = vsyncpa %s537, 1
    %539 = vsyncpa [#allocation6], 1
    %540 = vsyncpa [#allocation4], 1
    %s541 = scalar_lea.sflag [#allocation4], 1
    %542 = vsyncpa %s541, 1
    %543 = vsyncpa [#allocation9], 1
    %s544 = scalar_lea.sflag [#allocation9], 1
    %545 = vsyncpa %s544, 1

</llo_original>
